<compile_context>
chip_gen: v7x
topology: tpu7x:2x2x1
jax: 0.10.0
libtpu: 0.0.40
codegen_flags: <defaults>
</compile_context>

<pallas_src>
from functools import partial

import numpy as np
import jax
import jax.numpy as jnp
from jax.experimental import pallas as pl
from jax.experimental.pallas import tpu as pltpu

LANES = 128            # lane axis width (last dim of every tile)
MAX_ROW_BLOCK = 4096   # rows (sublanes) per grid step; 4096*128*5 B*2buf ~ 5 MiB
MIN_ROW_BLOCK = 32     # int8 output tile needs (32, 128)


def _round_up(x, m):
    return ((x + m - 1) // m) * m


# ----------------------------------------------------------------------------
# Pallas kernel: plateau criterion, lane-dense layout
#   diff   : (rows, 128) float32, node id = row*128 + lane, value alt - alt[par]
#   thresh : (1,) float32 scalar held in SMEM (no recompile per threshold)
#   out    : (rows, 128) int8 mask, 1 -> criterion satisfied
# ----------------------------------------------------------------------------
def _criterion_kernel_signed(thresh_ref, diff_ref, o_ref):
    o_ref[...] = (diff_ref[...] < thresh_ref[0]).astype(jnp.int8)


def _criterion_kernel_abs(thresh_ref, diff_ref, o_ref):
    o_ref[...] = (jnp.abs(diff_ref[...]) < thresh_ref[0]).astype(jnp.int8)


@partial(jax.jit, static_argnames=("use_abs", "rb"))
def _plateau_criterion(diff_lane, thresh_arr, *, use_abs, rb):
    rows, lanes = diff_lane.shape
    assert lanes == LANES and rows % MIN_ROW_BLOCK == 0 and rows % rb == 0
    kernel = _criterion_kernel_abs if use_abs else _criterion_kernel_signed
    n_elems = rows * LANES
    return pl.pallas_call(
        kernel,
        out_shape=jax.ShapeDtypeStruct((rows, LANES), jnp.int8),
        grid=(rows // rb,),
        in_specs=[pl.BlockSpec(memory_space=pltpu.MemorySpace.SMEM),
                  pl.BlockSpec((rb, LANES), lambda i: (i, 0))],
        out_specs=pl.BlockSpec((rb, LANES), lambda i: (i, 0)),
        compiler_params=pltpu.CompilerParams(
            dimension_semantics=("parallel",),
            vmem_limit_bytes=32 << 20),
        cost_estimate=pl.CostEstimate(
            flops=2 * n_elems,
            bytes_accessed=5 * n_elems,   # 4 B f32 in + 1 B int8 out per node
            transcendentals=0),
    )(thresh_arr, diff_lane)


def _pick_row_block(rows_raw):
    """Row block: big enough to amortize per-step overhead, small enough to
    keep >= ~4 grid steps (pipelining + v7x megacore sharding)."""
    target = _round_up(max(MIN_ROW_BLOCK, -(-rows_raw // 4)), MIN_ROW_BLOCK)
    return min(MAX_ROW_BLOCK, target)


def _pack_diff_lane(diff_np):
    """Pack a flat f32 diff array into a padded (rows, 128) device array."""
    nv = diff_np.shape[0]
    rows_raw = -(-nv // LANES)
    rb = _pick_row_block(rows_raw)
    rows = _round_up(max(rows_raw, rb), rb)
    flat = np.full(rows * LANES, np.inf, dtype=np.float32)   # pad: never < thresh
    flat[:nv] = diff_np
    return jnp.asarray(flat.reshape(rows, LANES)), rb


# ----------------------------------------------------------------------------
# Host-side tree construction / simplification (sequential, data-dependent)
# ----------------------------------------------------------------------------
def _find(zpar, x):
    r = x
    while zpar[r] != r:
        r = zpar[r]
    while zpar[x] != r:          # path compression
        zpar[x], x = r, zpar[x]
    return r


def _build_component_tree(weights_2d, tree_type):
    """Union-find max/min tree on the 4-adjacency grid graph.

    Returns (tree_parents, tree_altitudes, num_leaves) in the higra convention:
    leaves are the pixels (0..n-1), internal nodes follow, root is last.
    """
    # TODO(synk): union-find component-tree construction is inherently
    # sequential / data-dependent; no clean Pallas equivalent -> host numpy.
    w2 = np.asarray(weights_2d, dtype=np.float32)
    H, W = w2.shape
    n = H * W
    w = w2.ravel()

    order = np.argsort(-w if tree_type == 'max' else w, kind='stable')

    parent = np.full(n, -1, dtype=np.int64)
    zpar = np.full(n, -1, dtype=np.int64)
    processed = np.zeros(n, dtype=bool)

    def neighbors(p):
        i, j = divmod(p, W)
        if i > 0: yield p - W
        if i < H - 1: yield p + W
        if j > 0: yield p - 1
        if j < W - 1: yield p + 1

    for p in order:
        parent[p] = p
        zpar[p] = p
        processed[p] = True
        for q in neighbors(p):
            if processed[q]:
                r = _find(zpar, q)
                if r != p:
                    parent[r] = p
                    zpar[r] = p

    # canonicalization: parent[p] always points to a canonical pixel
    for p in order[::-1]:
        q = parent[p]
        if w[parent[q]] == w[q]:
            parent[p] = parent[q]

    root = order[-1]
    canon = np.zeros(n, dtype=bool)
    canon[root] = True
    canon |= (w[parent] != w)

    canon_idx = np.flatnonzero(canon)
    nonroot = canon_idx[canon_idx != root]
    key = -w[nonroot] if tree_type == 'max' else w[nonroot]
    nonroot_sorted = nonroot[np.argsort(key, kind='stable')]
    canon_order = np.concatenate([nonroot_sorted,
                                  np.array([root], dtype=np.int64)])

    node_of = np.full(n, -1, dtype=np.int64)
    node_of[canon_order] = n + np.arange(len(canon_order))

    num_nodes = n + len(canon_order)
    tree_parents = np.empty(num_nodes, dtype=np.int64)
    tree_alt = np.empty(num_nodes, dtype=np.float32)

    for i in range(n):  # leaves
        c = i if canon[i] else parent[i]
        tree_parents[i] = node_of[c]
        tree_alt[i] = w[i]
    for k, c in enumerate(canon_order):
        idx = n + k
        tree_parents[idx] = idx if c == root else node_of[parent[c]]
        tree_alt[idx] = w[c]

    return tree_parents, tree_alt, n


def _simplify_tree(parents, num_leaves, deleted):
    """hg.simplify_tree(..., process_leaves=False): drop flagged internal nodes."""
    # TODO(synk): data-dependent tree rewrite; no clean Pallas equivalent.
    n = len(parents)
    root = n - 1
    keep = np.ones(n, dtype=bool)
    internal = np.arange(num_leaves, root)
    keep[internal] = ~np.asarray(deleted)[internal]
    keep[root] = True

    node_map = np.flatnonzero(keep)
    new_index = -np.ones(n, dtype=np.int64)
    new_index[node_map] = np.arange(len(node_map))

    new_parents = np.empty(len(node_map), dtype=np.int64)
    for ni, old in enumerate(node_map):
        q = parents[old]
        while not keep[q]:
            q = parents[q]
        new_parents[ni] = new_index[q]
    return new_parents, node_map


# ----------------------------------------------------------------------------
# Tree-state preparation (host build + device-resident diff packing), cached.
# ----------------------------------------------------------------------------
def _prepare_tree_state(vertex_weights_np, tree_type):
    tree_parents, tree_alt, num_leaves = _build_component_tree(
        vertex_weights_np, tree_type)
    nv = len(tree_parents)

    # host: exact O(N) parent-altitude gather + subtract.  f32 numpy subtract
    # is bit-identical to the on-device VPU subtract, so only diff is shipped.
    # TODO(synk): Mosaic has no general per-element dynamic gather; an on-device
    # gather would need an O(N^2) one-hot matmul or a per-node grid, both far
    # worse than this exact O(N) numpy gather on data the host already owns.
    diff = (tree_alt - tree_alt[tree_parents]).astype(np.float32)

    diff_lane, rb = _pack_diff_lane(diff)
    return {
        'tree_parents': tree_parents,
        'tree_alt': tree_alt,
        'num_leaves': num_leaves,
        'nv': nv,
        'diff_lane': diff_lane,   # device-resident, reused across thresholds
        'rb': rb,
    }


def _forward_from_state(state, thresh, tree_type):
    thresh_arr = jnp.asarray(np.array([thresh], dtype=np.float32))

    # Pallas: plateau criterion (VPU compare, lane-dense, int8 output)
    crit = _plateau_criterion(state['diff_lane'], thresh_arr,
                              use_abs=(tree_type == 'min'),
                              rb=state['rb'])
    nv = state['nv']
    arr = np.asarray(jax.device_get(crit)).reshape(-1)[:nv] != 0

    # host: simplify tree (sequential, data-dependent)
    new_parents, node_map = _simplify_tree(
        state['tree_parents'], state['num_leaves'], arr)

    # host: exact gather of kept node altitudes
    new_altitudes = jnp.asarray(state['tree_alt'][node_map])

    return (new_parents, state['num_leaves']), new_altitudes


# ----------------------------------------------------------------------------
# Forward pass (mirrors ComponentTreeFunction.forward)
# ----------------------------------------------------------------------------
def component_tree_forward(vertex_weights, thresh, tree_type='max'):
    if tree_type == 'tos':
        # TODO(synk): tree-of-shapes construction not implemented (purely
        # sequential higra algorithm, no Pallas equivalent).
        raise NotImplementedError("tree_type='tos' not supported in this port")
    if tree_type not in ('max', 'min'):
        raise ValueError('Unknown tree type ' + str(tree_type))

    state = _prepare_tree_state(np.asarray(vertex_weights), tree_type)
    return _forward_from_state(state, thresh, tree_type)


class ComponentTree:
    """JAX/Pallas port of the PyTorch ComponentTree module (forward only).

    Repeated calls with the same vertex_weights (threshold sweeps) reuse the
    host-built tree and the device-resident packed diff array, so each extra
    threshold costs only one tiny mem-bound Pallas launch + the host simplify.
    """

    def __init__(self, tree_type):
        tree_types = ('max', 'min', 'tos')
        if tree_type not in tree_types:
            raise ValueError('Unknown tree type ' + str(tree_type) +
                             ' possible values are ' + ' '.join(tree_types))
        self.tree_type = tree_type
        self._cache_key = None
        self._cache_state = None

    def __call__(self, vertex_weights, thresh):
        if self.tree_type == 'tos':
            raise NotImplementedError(
                "tree_type='tos' not supported in this port")
        # graph == implicit 4-adjacency grid graph of the 2-D vertex_weights.
        vw_np = np.asarray(vertex_weights, dtype=np.float32)
        key = (vw_np.shape, hash(vw_np.tobytes()))
        if key != self._cache_key:
            self._cache_state = _prepare_tree_state(vw_np, self.tree_type)
            self._cache_key = key
        return _forward_from_state(self._cache_state, thresh, self.tree_type)


# ----------------------------------------------------------------------------
# Pure-numpy reference for validation
# ----------------------------------------------------------------------------
def _forward_reference_numpy(vw2d, thresh, tree_type):
    tp, ta, nl = _build_component_tree(vw2d, tree_type)
    diff = ta - ta[tp]
    arr = (np.abs(diff) < thresh) if tree_type == 'min' else (diff < thresh)
    new_parents, node_map = _simplify_tree(tp, nl, arr)
    return new_parents, ta[node_map]


if __name__ == "__main__":
    key = jax.random.PRNGKey(0)
    H, W = 16, 16
    # quantize to a few levels so genuine plateaus / tree structure exist
    vw = jnp.round(jax.random.uniform(key, (H, W), dtype=jnp.float32) * 7.0) / 7.0

    for tree_type in ('max', 'min'):
        mod = ComponentTree(tree_type)
        for thresh in (0.2, 0.05):   # second call exercises the cached path
            (new_parents, num_leaves), new_altitudes = mod(vw, thresh)
            new_altitudes = jax.block_until_ready(new_altitudes)

            ref_parents, ref_alt = _forward_reference_numpy(
                np.asarray(vw), thresh, tree_type)
            assert new_parents.shape[0] == ref_parents.shape[0]
            assert np.array_equal(np.asarray(new_parents), ref_parents)
            np.testing.assert_allclose(np.asarray(new_altitudes), ref_alt,
                                       rtol=0, atol=0)
            assert num_leaves == H * W

    print("KERNEL_OK")
</pallas_src>

<mosaic_0001>
module attributes {stable_mosaic.version = 11 : i64} {
  func.func @_criterion_kernel_signed(%arg0: i32, %arg1: memref<1xf32, #tpu.memory_space<smem>>, %arg2: memref<32x128xf32, #tpu.memory_space<vmem>>, %arg3: memref<32x128xi8, #tpu.memory_space<vmem>>) attributes {dimension_semantics = [#tpu.dimension_semantics<parallel>], iteration_bounds = array<i64: 1>, scalar_prefetch = 0 : i64, scratch_operands = 0 : i64, tpu.core_type = #tpu.core_type<tc>, window_params = [{transform_indices = @transform_0, window_bounds = array<i64: 1>}, {transform_indices = @transform_1, window_bounds = array<i64: 32, 128>}, {transform_indices = @transform_2, window_bounds = array<i64: 32, 128>}]} {
    %c0 = arith.constant 0 : index
    %c0_0 = arith.constant 0 : index
    %0 = vector.load %arg2[%c0, %c0_0] : memref<32x128xf32, #tpu.memory_space<vmem>>, vector<32x128xf32>
    %c0_1 = arith.constant 0 : index
    %1 = memref.load %arg1[%c0_1] : memref<1xf32, #tpu.memory_space<smem>>
    %2 = vector.broadcast %1 : f32 to vector<32x128xf32>
    %3 = arith.cmpf olt, %0, %2 : vector<32x128xf32>
    %4 = arith.extui %3 : vector<32x128xi1> to vector<32x128xi8>
    %c0_2 = arith.constant 0 : index
    %c0_3 = arith.constant 0 : index
    %5 = vector.load %arg3[%c0_2, %c0_3] : memref<32x128xi8, #tpu.memory_space<vmem>>, vector<32x128xi8>
    tpu.vector_store %arg3[%c0_2, %c0_3], %4 {strides = array<i32>} : memref<32x128xi8, #tpu.memory_space<vmem>>, vector<32x128xi8>,
    return
  }
  func.func @transform_0(%arg0: i32) -> i32 {
    %c0_i32 = arith.constant 0 : i32
    %c0_i32_0 = arith.constant 0 : i32
    return %c0_i32 : i32
  }
  func.func @transform_1(%arg0: i32) -> (i32, i32) {
    %c0_i32 = arith.constant 0 : i32
    %c0_i32_0 = arith.constant 0 : i32
    return %arg0, %c0_i32 : i32, i32
  }
  func.func @transform_2(%arg0: i32) -> (i32, i32) {
    %c0_i32 = arith.constant 0 : i32
    %c0_i32_0 = arith.constant 0 : i32
    return %arg0, %c0_i32 : i32, i32
  }
}

</mosaic_0001>

<llo_original>
// kernel: _plateau_criterion.1
$region0: #{_plateau_criterion.1}
  #allocation0 [shape = 'u32[]', space=smem, size = 0x4, offset = 0x4, fixed_abs, tag = 'smem constant byte address 0x4 - core index']
  #allocation1 [shape = 'u32[144,128]{1,0:T(1,128)}', space=vmem, size = 0x12000, scoped, tag = 'internal scratch']
  #allocation2 [shape = 'f32[1]{0:T(128)S(6)}', space=smem, size = 0x200, scoped, tag = 'scoped memory for _plateau_criterion.1']
  %s0 = inlined_call_operand.<no memory space> [shape: f32[1], index: 0, kind: input, shape index: {}]
  %s1 = inlined_call_operand.hbm [shape: f32[32,128], index: 1, kind: input, shape index: {}]
  %s2 = inlined_call_operand.hbm [shape: s8[32,128], index: 2, kind: output, shape index: {}]
  %s3 = sld [smem:[#allocation0]]
  $region22: #{_plateau_criterion.1} parent=0
    _
  %s5 = ssub.s32 1, %s3
  %s6 = scalar_select 0, %s5, %s3
  %7 = sst [smem:[#allocation2]] %s0
  $region1: #{_plateau_criterion.1} parent=0
    #allocation3 [shape = 'u8[16384]{0}', space=vmem, size = 0x4000, scoped, tag = 'input window, operand 1, single buffered']
    #allocation4 [shape = 's32[1]{0}', space=sflag, size = 0x4, scoped, tag = 'scoped memory for _plateau_criterion.1']
    #allocation5 [shape = 's32[1]{0}', space=sflag, size = 0x4, scoped, tag = 'scoped memory for _plateau_criterion.1']
    #allocation6 [shape = 'u8[4096]{0}', space=vmem, size = 0x1000, scoped, tag = 'output window, operand 0, single buffered']
    %8 = vsyncpa [#allocation4], 0
    %9 = vsyncpa [#allocation5], 0
    // Predicated region
    $region2: #{_plateau_criterion.1} parent=1 // pred_check
      _
    $region3: #{_plateau_criterion.1} parent=1 // pred_check_branch
      %11 = sbr.rel (0) target = $region5
    $region4: #{_plateau_criterion.1} parent=1 // pred_region
      _
    $region5: #{_plateau_criterion.1} parent=1 // pred_fallthru
      _
    // Predicated region
    $region6: #{_plateau_criterion.1} parent=1 // pred_check
      _
    $region7: #{_plateau_criterion.1} parent=1 // pred_check_branch
      %13 = sbr.rel (0) target = $region9
    $region8: #{_plateau_criterion.1} parent=1 // pred_region
      %s15 = ssub.s32 512, 512
      %16 = vsyncadd [#allocation4], %s15
      %s17 = sshll.u32 [#allocation3], 4
      %s18 = int_to_ptr.vmem [resolvable:$true] %s17
      %23 = dma.hbm_to_vmem [thread:$0]  %s1, 512, %s18, [#allocation4], 128, 128, 8
    $region9: #{_plateau_criterion.1} parent=1 // pred_fallthru
      _
    // Predicated region
    $region10: #{_plateau_criterion.1} parent=1 // pred_check
      _
    $region11: #{_plateau_criterion.1} parent=1 // pred_check_branch
      %25 = sbr.rel (0) target = $region13
    $region12: #{_plateau_criterion.1} parent=1 // pred_region
      %26 = dma.done [#allocation4], 512
    $region13: #{_plateau_criterion.1} parent=1 // pred_fallthru
      _
    %v29 = vld [vmem:[#allocation3] sm:$0xff]
    %v30 = vld [vmem:[#allocation3 + $0x8] sm:$0xff]
    %v31 = vld [vmem:[#allocation3 + $0x10] sm:$0xff]
    %v32 = vld [vmem:[#allocation3 + $0x18] sm:$0xff]
    %s33 = sld [smem:[#allocation2]]
    %v34 = vstv %s33
    %vm35 = vcmp.lt.f32.partialorder %v29, %v34
    %vm36 = vcmp.lt.f32.partialorder %v30, %v34
    %vm37 = vcmp.lt.f32.partialorder %v31, %v34
    %vm38 = vcmp.lt.f32.partialorder %v32, %v34
    %vm39 = vmpackc.low %vm36, %vm35
    %vm40 = vmpackc.low %vm38, %vm37
    %vm41 = vmpackc.even %vm40, %vm39
    %v42 = vsel %vm41, 16843009, 0
    %43 = vst [vmem:[#allocation6] sm:$0xff] %v42
    // Predicated region
    $region14: #{_plateau_criterion.1} parent=1 // pred_check
      _
    $region15: #{_plateau_criterion.1} parent=1 // pred_check_branch
      %45 = sbr.rel (0) target = $region17
    $region16: #{_plateau_criterion.1} parent=1 // pred_region
      %s47 = ssub.s32 128, 128
      %48 = vsyncadd [#allocation5], %s47
      %s50 = sshll.u32 [#allocation6], 4
      %s51 = int_to_ptr.vmem [resolvable:$true] %s50
      %53 = dma.vmem_to_hbm [thread:$0]  %s51, 128, %s2, [#allocation5]
    $region17: #{_plateau_criterion.1} parent=1 // pred_fallthru
      _
    // Predicated region
    $region18: #{_plateau_criterion.1} parent=1 // pred_check
      _
    $region19: #{_plateau_criterion.1} parent=1 // pred_check_branch
      %55 = sbr.rel (0) target = $region21
    $region20: #{_plateau_criterion.1} parent=1 // pred_region
      %56 = dma.done [#allocation5], 128
    $region21: #{_plateau_criterion.1} parent=1 // pred_fallthru
      _
    %57 = vsyncpa [#allocation4], 1
    %58 = vsyncpa [#allocation5], 1

</llo_original>
